<compile_context>
chip_gen: v7x
topology: tpu7x:2x2x1
jax: 0.10.0
libtpu: 0.0.40
codegen_flags: <defaults>
</compile_context>

<pallas_src>
import math
import numpy as np
import jax
import jax.numpy as jnp
from jax import lax
from jax.experimental import pallas as pl
from jax.experimental.pallas import tpu as pltpu  # noqa: F401 (TPU backend)

B, T, C, N_HEAD = 2, 8, 32, 4
HD = C // N_HEAD
BT = B * T                    # total tokens per call (batch collapsed)
Z = N_HEAD * BT               # stacked (head, batch*time) rows for batched attention
EPS = 1e-5
INV_SQRT_HD = 1.0 / math.sqrt(HD)


def _build_masks():
    """Static (Z, C+BT) f32 slab: [head 0/1 multiplier | causal/batch additive bias]."""
    z = np.arange(Z)
    i = z % BT                            # flattened token row for stacked row z
    zb, zt = i // T, i % T
    j = np.arange(BT)
    jb, jt = j // T, j % T
    valid = (zb[:, None] == jb[None, :]) & (zt[:, None] >= jt[None, :])
    att_bias = np.where(valid, 0.0, -1e30).astype(np.float32)                     # (Z, BT)
    head_mask = (z[:, None] // BT == np.arange(C)[None, :] // HD).astype(np.float32)  # (Z, C)
    return np.concatenate([head_mask, att_bias], axis=1)                          # (Z, C+BT)


def _layernorm(x, g, b):
    mu = jnp.mean(x, axis=-1, keepdims=True)
    var = jnp.mean((x - mu) ** 2, axis=-1, keepdims=True)
    return (x - mu) * jax.lax.rsqrt(var + EPS) * g + b


def _gelu_tanh(x):
    c = math.sqrt(2.0 / math.pi)
    return 0.5 * x * (1.0 + jnp.tanh(c * (x + 0.044715 * x * x * x)))


def block_kernel(x_ref, masks_ref, vecs_ref, w_ref, o_ref):
    x = x_ref[...].astype(jnp.float32)                       # (BT, C)

    # static slices of the packed operands (zero runtime cost for the slicing itself)
    head_mask = masks_ref[:, :C]                             # (Z, C)  0/1
    att_bias = masks_ref[:, C:]                              # (Z, BT) 0 / -1e30
    ln1_g = vecs_ref[:, 0 * C:1 * C]
    ln1_b = vecs_ref[:, 1 * C:2 * C]
    b_attn = vecs_ref[:, 2 * C:5 * C]                        # q-part already pre-scaled
    b_ap = vecs_ref[:, 5 * C:6 * C]
    ln2_g = vecs_ref[:, 6 * C:7 * C]
    ln2_b = vecs_ref[:, 7 * C:8 * C]
    b_fc = vecs_ref[:, 8 * C:12 * C]
    b_mp = vecs_ref[:, 12 * C:13 * C]

    # ---------------- attention branch ----------------
    h = _layernorm(x, ln1_g, ln1_b)
    qkv = jnp.dot(h.astype(jnp.bfloat16), w_ref[:, 0:3 * C],
                  preferred_element_type=jnp.float32) + b_attn          # (BT, 3C)
    q = qkv[:, :C]                    # already scaled by 1/sqrt(HD) via packed weights/bias
    k = qkv[:, C:2 * C]
    v = qkv[:, 2 * C:]

    # Batch all (batch, head) attention problems into ONE score matmul + ONE softmax:
    # stacked row z = head*BT + token carries q[token] with non-head channels zeroed, so a
    # single (Z,C)x(BT,C)^T contraction yields every per-head q.k^T block.
    q_stack = (head_mask.reshape(N_HEAD, BT, C) * q.reshape(1, BT, C)).reshape(Z, C)

    s = lax.dot_general(q_stack.astype(jnp.bfloat16), k.astype(jnp.bfloat16),
                        (((1,), (1,)), ((), ())),
                        preferred_element_type=jnp.float32)             # (Z, BT)
    s = s + att_bias                  # additive causal/batch mask (finite: no inf-inf NaN)
    s = s - jnp.max(s, axis=-1, keepdims=True)
    p = jnp.exp(s)
    p = p * pl.reciprocal(jnp.sum(p, axis=-1, keepdims=True), approx=True)

    y_stack = jnp.dot(p.astype(jnp.bfloat16), v.astype(jnp.bfloat16),
                      preferred_element_type=jnp.float32)               # (Z, C)
    y_stack = y_stack * head_mask     # zero cross-head garbage channels
    y = y_stack[0:BT]
    for hh in range(1, N_HEAD):       # collapse heads: each channel lives in exactly one row block
        y = y + y_stack[hh * BT:(hh + 1) * BT]                          # (BT, C)

    y = jnp.dot(y.astype(jnp.bfloat16), w_ref[:, 3 * C:4 * C],
                preferred_element_type=jnp.float32) + b_ap
    x = x + y

    # ---------------- MLP branch ----------------
    h2 = _layernorm(x, ln2_g, ln2_b)
    f = jnp.dot(h2.astype(jnp.bfloat16), w_ref[:, 4 * C:8 * C],
                preferred_element_type=jnp.float32) + b_fc              # (BT, 4C)
    f = _gelu_tanh(f)
    # w_mp stored transposed (C, 4C) in the slab -> contract on dim 1 of both.
    m = lax.dot_general(f.astype(jnp.bfloat16), w_ref[:, 8 * C:12 * C],
                        (((1,), (1,)), ((), ())),
                        preferred_element_type=jnp.float32) + b_mp      # (BT, C)

    o_ref[...] = (x + m).astype(o_ref.dtype)


def pack_params(p):
    """One-time host-side packing of all Block parameters into 3 kernel operands."""
    w_attn = p["w_attn"].astype(jnp.float32)
    b_attn = p["b_attn"].astype(jnp.float32)
    # Fold the 1/sqrt(HD) attention scale into the q-producing slice of c_attn (free at runtime).
    w_attn = w_attn.at[:, :C].multiply(INV_SQRT_HD)
    b_attn = b_attn.at[:, :C].multiply(INV_SQRT_HD)

    w_slab = jnp.concatenate(
        [w_attn, p["w_ap"], p["w_fc"], p["w_mp"].T], axis=1).astype(jnp.bfloat16)   # (C, 12C)
    vecs = jnp.concatenate(
        [p["ln1_g"], p["ln1_b"], b_attn, p["b_ap"],
         p["ln2_g"], p["ln2_b"], p["b_fc"], p["b_mp"]], axis=1).astype(jnp.float32)  # (1, 13C)
    masks = jnp.asarray(_build_masks())                                               # (Z, C+BT)
    return masks, vecs, w_slab


def gpt2_block(x, packed):
    """Pallas TPU forward for the GPT-2 Block. x: (B, T, C) float32."""
    masks, vecs, w_slab = packed
    xf = x.reshape(BT, C)
    # Single grid-free invocation: everything fits comfortably in VMEM at these shapes, so
    # per-grid-step overhead is paid exactly once and only 4 DMA descriptors are issued.
    # TODO(synk): at real GPT-2 scale (T~1024, C~768) do NOT scale up the head-stacked score
    # trick (8-12x redundant MXU FLOPs, score slab blows v7x's 64 MiB VMEM); switch to a
    # per-(batch,head) flash-attention grid with online softmax, tile the 4C hidden dim as an
    # "arbitrary" reduction axis with a VMEM f32 accumulator + pl.when init/finalize, add a
    # "parallel" batch/row axis to occupy v7x's 2 TensorCores, keep output last dims at
    # multiples of 128 lanes, and set vmem_limit_bytes per chip generation.
    out = pl.pallas_call(
        block_kernel,
        out_shape=jax.ShapeDtypeStruct((BT, C), x.dtype),
    )(xf, masks, vecs, w_slab)
    return out.reshape(B, T, C)


def _reference(x, p):
    """Pure-JAX (f32) reference of the same Block forward."""
    def ln(z, g, b):
        mu = jnp.mean(z, axis=-1, keepdims=True)
        var = jnp.mean((z - mu) ** 2, axis=-1, keepdims=True)
        return (z - mu) * jax.lax.rsqrt(var + EPS) * g + b

    h = ln(x, p["ln1_g"][0], p["ln1_b"][0])
    qkv = h @ p["w_attn"] + p["b_attn"][0]
    q, k, v = jnp.split(qkv, 3, axis=-1)
    q = q.reshape(B, T, N_HEAD, HD).transpose(0, 2, 1, 3)
    k = k.reshape(B, T, N_HEAD, HD).transpose(0, 2, 1, 3)
    v = v.reshape(B, T, N_HEAD, HD).transpose(0, 2, 1, 3)
    att = jnp.einsum("bhqd,bhkd->bhqk", q, k) / math.sqrt(HD)
    mask = jnp.tril(jnp.ones((T, T), bool))
    att = jnp.where(mask[None, None], att, -jnp.inf)
    att = jax.nn.softmax(att, axis=-1)
    y = jnp.einsum("bhqk,bhkd->bhqd", att, v)
    y = y.transpose(0, 2, 1, 3).reshape(B, T, C)
    y = y @ p["w_ap"] + p["b_ap"][0]
    x = x + y

    h2 = ln(x, p["ln2_g"][0], p["ln2_b"][0])
    f = h2 @ p["w_fc"] + p["b_fc"][0]
    cst = math.sqrt(2.0 / math.pi)
    f = 0.5 * f * (1.0 + jnp.tanh(cst * (f + 0.044715 * f ** 3)))
    m = f @ p["w_mp"] + p["b_mp"][0]
    return x + m


if __name__ == "__main__":
    key = jax.random.PRNGKey(0)
    keys = jax.random.split(key, 8)

    x = jax.random.normal(keys[0], (B, T, C), jnp.float32)

    params = {
        "ln1_g": jnp.ones((1, C), jnp.float32),
        "ln1_b": jnp.zeros((1, C), jnp.float32),
        "w_attn": 0.02 * jax.random.normal(keys[1], (C, 3 * C), jnp.float32),
        "b_attn": 0.01 * jax.random.normal(keys[2], (1, 3 * C), jnp.float32),
        "w_ap": 0.02 * jax.random.normal(keys[3], (C, C), jnp.float32),
        "b_ap": 0.01 * jax.random.normal(keys[4], (1, C), jnp.float32),
        "ln2_g": jnp.ones((1, C), jnp.float32),
        "ln2_b": jnp.zeros((1, C), jnp.float32),
        "w_fc": 0.02 * jax.random.normal(keys[5], (C, 4 * C), jnp.float32),
        "b_fc": 0.01 * jax.random.normal(keys[6], (1, 4 * C), jnp.float32),
        "w_mp": 0.02 * jax.random.normal(keys[7], (4 * C, C), jnp.float32),
        "b_mp": jnp.zeros((1, C), jnp.float32),
    }

    ref = _reference(x, params)                 # f32 reference, computed first

    packed = pack_params(params)                # one-time weight/mask packing (3 operands)
    out = gpt2_block(x, packed)
    out = jax.block_until_ready(out)

    assert out.shape == (B, T, C)
    # Kernel feeds the MXU bf16 operands (f32 accumulation), so compare against the
    # f32 reference with a bf16-appropriate tolerance.
    assert jnp.allclose(out, ref, atol=2e-2, rtol=2e-2), "mismatch vs pure-JAX reference"

    print("KERNEL_OK")
</pallas_src>

<mosaic_0001>
module attributes {stable_mosaic.version = 11 : i64} {
  func.func @block_kernel(%arg0: memref<16x32xf32, #tpu.memory_space<vmem>>, %arg1: memref<64x48xf32, #tpu.memory_space<vmem>>, %arg2: memref<1x416xf32, #tpu.memory_space<vmem>>, %arg3: memref<32x384xbf16, #tpu.memory_space<vmem>>, %arg4: memref<16x32xf32, #tpu.memory_space<vmem>>) attributes {dimension_semantics = [], scalar_prefetch = 0 : i64, scratch_operands = 0 : i64, tpu.core_type = #tpu.core_type<tc>} {
    %c0 = arith.constant 0 : index
    %c0_0 = arith.constant 0 : index
    %0 = vector.load %arg0[%c0, %c0_0] : memref<16x32xf32, #tpu.memory_space<vmem>>, vector<16x32xf32>
    %c0_1 = arith.constant 0 : index
    %c0_2 = arith.constant 0 : index
    %1 = vector.load %arg1[%c0_1, %c0_2] : memref<64x48xf32, #tpu.memory_space<vmem>>, vector<64x32xf32>
    %c0_3 = arith.constant 0 : index
    %c32 = arith.constant 32 : index
    %2 = vector.load %arg1[%c0_3, %c32] : memref<64x48xf32, #tpu.memory_space<vmem>>, vector<64x16xf32>
    %c0_4 = arith.constant 0 : index
    %c0_5 = arith.constant 0 : index
    %3 = vector.load %arg2[%c0_4, %c0_5] : memref<1x416xf32, #tpu.memory_space<vmem>>, vector<1x32xf32>
    %c0_6 = arith.constant 0 : index
    %c32_7 = arith.constant 32 : index
    %4 = vector.load %arg2[%c0_6, %c32_7] : memref<1x416xf32, #tpu.memory_space<vmem>>, vector<1x32xf32>
    %c0_8 = arith.constant 0 : index
    %c64 = arith.constant 64 : index
    %5 = vector.load %arg2[%c0_8, %c64] : memref<1x416xf32, #tpu.memory_space<vmem>>, vector<1x96xf32>
    %c0_9 = arith.constant 0 : index
    %c160 = arith.constant 160 : index
    %6 = vector.load %arg2[%c0_9, %c160] : memref<1x416xf32, #tpu.memory_space<vmem>>, vector<1x32xf32>
    %c0_10 = arith.constant 0 : index
    %c192 = arith.constant 192 : index
    %7 = vector.load %arg2[%c0_10, %c192] : memref<1x416xf32, #tpu.memory_space<vmem>>, vector<1x32xf32>
    %c0_11 = arith.constant 0 : index
    %c224 = arith.constant 224 : index
    %8 = vector.load %arg2[%c0_11, %c224] : memref<1x416xf32, #tpu.memory_space<vmem>>, vector<1x32xf32>
    %c0_12 = arith.constant 0 : index
    %c256 = arith.constant 256 : index
    %9 = vector.load %arg2[%c0_12, %c256] : memref<1x416xf32, #tpu.memory_space<vmem>>, vector<1x128xf32>
    %c0_13 = arith.constant 0 : index
    %c384 = arith.constant 384 : index
    %10 = vector.load %arg2[%c0_13, %c384] : memref<1x416xf32, #tpu.memory_space<vmem>>, vector<1x32xf32>
    %cst = arith.constant dense<0.000000e+00> : vector<16xf32>
    %11 = vector.multi_reduction <add>, %0, %cst [1] : vector<16x32xf32> to vector<16xf32>
    %12 = vector.shape_cast %11 : vector<16xf32> to vector<16x1xf32>
    %cst_14 = arith.constant 3.200000e+01 : f32
    %13 = vector.broadcast %cst_14 : f32 to vector<16x1xf32>
    %14 = arith.divf %12, %13 : vector<16x1xf32>
    %15 = vector.broadcast %14 : vector<16x1xf32> to vector<16x32xf32>
    %16 = arith.subf %0, %15 : vector<16x32xf32>
    %17 = arith.mulf %16, %16 : vector<16x32xf32>
    %cst_15 = arith.constant dense<0.000000e+00> : vector<16xf32>
    %18 = vector.multi_reduction <add>, %17, %cst_15 [1] : vector<16x32xf32> to vector<16xf32>
    %19 = vector.shape_cast %18 : vector<16xf32> to vector<16x1xf32>
    %cst_16 = arith.constant 3.200000e+01 : f32
    %20 = vector.broadcast %cst_16 : f32 to vector<16x1xf32>
    %21 = arith.divf %19, %20 : vector<16x1xf32>
    %22 = vector.broadcast %14 : vector<16x1xf32> to vector<16x32xf32>
    %23 = arith.subf %0, %22 : vector<16x32xf32>
    %cst_17 = arith.constant 9.99999974E-6 : f32
    %24 = vector.broadcast %cst_17 : f32 to vector<16x1xf32>
    %25 = arith.addf %21, %24 : vector<16x1xf32>
    %26 = math.rsqrt %25 : vector<16x1xf32>
    %27 = vector.broadcast %26 : vector<16x1xf32> to vector<16x32xf32>
    %28 = arith.mulf %23, %27 : vector<16x32xf32>
    %29 = vector.broadcast %3 : vector<1x32xf32> to vector<16x32xf32>
    %30 = arith.mulf %28, %29 : vector<16x32xf32>
    %31 = vector.broadcast %4 : vector<1x32xf32> to vector<16x32xf32>
    %32 = arith.addf %30, %31 : vector<16x32xf32>
    %33 = arith.truncf %32 : vector<16x32xf32> to vector<16x32xbf16>
    %c0_18 = arith.constant 0 : index
    %c0_19 = arith.constant 0 : index
    %34 = vector.load %arg3[%c0_18, %c0_19] : memref<32x384xbf16, #tpu.memory_space<vmem>>, vector<32x96xbf16>
    %cst_20 = arith.constant dense<0.000000e+00> : vector<16x96xf32>
    %35 = tpu.matmul %33, %34, %cst_20 {dimension_numbers = #tpu.dot_dimension_numbers<[1], [0], [0], [1], [0, 0, 1, 1], [], []>} : vector<16x32xbf16>, vector<32x96xbf16>, vector<16x96xf32> -> vector<16x96xf32>
    %36 = vector.broadcast %5 : vector<1x96xf32> to vector<16x96xf32>
    %37 = arith.addf %35, %36 : vector<16x96xf32>
    %38 = vector.extract_strided_slice %37 {offsets = [0, 0], sizes = [16, 32], strides = [1, 1]} : vector<16x96xf32> to vector<16x32xf32>
    %39 = vector.extract_strided_slice %37 {offsets = [0, 32], sizes = [16, 32], strides = [1, 1]} : vector<16x96xf32> to vector<16x32xf32>
    %40 = vector.extract_strided_slice %37 {offsets = [0, 64], sizes = [16, 32], strides = [1, 1]} : vector<16x96xf32> to vector<16x32xf32>
    %41 = vector.shape_cast %1 : vector<64x32xf32> to vector<4x16x32xf32>
    %42 = vector.shape_cast %38 : vector<16x32xf32> to vector<1x16x32xf32>
    %43 = vector.broadcast %42 : vector<1x16x32xf32> to vector<4x16x32xf32>
    %44 = arith.mulf %41, %43 : vector<4x16x32xf32>
    %45 = vector.shape_cast %44 : vector<4x16x32xf32> to vector<64x32xf32>
    %46 = arith.truncf %45 : vector<64x32xf32> to vector<64x32xbf16>
    %47 = arith.truncf %39 : vector<16x32xf32> to vector<16x32xbf16>
    %cst_21 = arith.constant dense<0.000000e+00> : vector<64x16xf32>
    %48 = tpu.matmul %46, %47, %cst_21 {dimension_numbers = #tpu.dot_dimension_numbers<[1], [1], [0], [0], [0, 0, 1, 0], [], []>} : vector<64x32xbf16>, vector<16x32xbf16>, vector<64x16xf32> -> vector<64x16xf32>
    %49 = arith.addf %48, %2 : vector<64x16xf32>
    %cst_22 = arith.constant dense<0xFF800000> : vector<64xf32>
    %50 = vector.multi_reduction <maximumf>, %49, %cst_22 [1] : vector<64x16xf32> to vector<64xf32>
    %51 = vector.shape_cast %50 : vector<64xf32> to vector<64x1xf32>
    %52 = vector.broadcast %51 : vector<64x1xf32> to vector<64x16xf32>
    %53 = arith.subf %49, %52 : vector<64x16xf32>
    %54 = math.exp %53 : vector<64x16xf32>
    %cst_23 = arith.constant dense<0.000000e+00> : vector<64xf32>
    %55 = vector.multi_reduction <add>, %54, %cst_23 [1] : vector<64x16xf32> to vector<64xf32>
    %56 = vector.shape_cast %55 : vector<64xf32> to vector<64x1xf32>
    %57 = tpu.reciprocal %56 {approx = true} : vector<64x1xf32> -> vector<64x1xf32>
    %58 = vector.broadcast %57 : vector<64x1xf32> to vector<64x16xf32>
    %59 = arith.mulf %54, %58 : vector<64x16xf32>
    %60 = arith.truncf %59 : vector<64x16xf32> to vector<64x16xbf16>
    %61 = arith.truncf %40 : vector<16x32xf32> to vector<16x32xbf16>
    %cst_24 = arith.constant dense<0.000000e+00> : vector<64x32xf32>
    %62 = tpu.matmul %60, %61, %cst_24 {dimension_numbers = #tpu.dot_dimension_numbers<[1], [0], [0], [1], [0, 0, 1, 1], [], []>} : vector<64x16xbf16>, vector<16x32xbf16>, vector<64x32xf32> -> vector<64x32xf32>
    %63 = arith.mulf %62, %1 : vector<64x32xf32>
    %64 = vector.extract_strided_slice %63 {offsets = [0, 0], sizes = [16, 32], strides = [1, 1]} : vector<64x32xf32> to vector<16x32xf32>
    %65 = vector.extract_strided_slice %63 {offsets = [16, 0], sizes = [16, 32], strides = [1, 1]} : vector<64x32xf32> to vector<16x32xf32>
    %66 = arith.addf %64, %65 : vector<16x32xf32>
    %67 = vector.extract_strided_slice %63 {offsets = [32, 0], sizes = [16, 32], strides = [1, 1]} : vector<64x32xf32> to vector<16x32xf32>
    %68 = arith.addf %66, %67 : vector<16x32xf32>
    %69 = vector.extract_strided_slice %63 {offsets = [48, 0], sizes = [16, 32], strides = [1, 1]} : vector<64x32xf32> to vector<16x32xf32>
    %70 = arith.addf %68, %69 : vector<16x32xf32>
    %71 = arith.truncf %70 : vector<16x32xf32> to vector<16x32xbf16>
    %c0_25 = arith.constant 0 : index
    %c96 = arith.constant 96 : index
    %72 = vector.load %arg3[%c0_25, %c96] : memref<32x384xbf16, #tpu.memory_space<vmem>>, vector<32x32xbf16>
    %cst_26 = arith.constant dense<0.000000e+00> : vector<16x32xf32>
    %73 = tpu.matmul %71, %72, %cst_26 {dimension_numbers = #tpu.dot_dimension_numbers<[1], [0], [0], [1], [0, 0, 1, 1], [], []>} : vector<16x32xbf16>, vector<32x32xbf16>, vector<16x32xf32> -> vector<16x32xf32>
    %74 = vector.broadcast %6 : vector<1x32xf32> to vector<16x32xf32>
    %75 = arith.addf %73, %74 : vector<16x32xf32>
    %76 = arith.addf %0, %75 : vector<16x32xf32>
    %cst_27 = arith.constant dense<0.000000e+00> : vector<16xf32>
    %77 = vector.multi_reduction <add>, %76, %cst_27 [1] : vector<16x32xf32> to vector<16xf32>
    %78 = vector.shape_cast %77 : vector<16xf32> to vector<16x1xf32>
    %cst_28 = arith.constant 3.200000e+01 : f32
    %79 = vector.broadcast %cst_28 : f32 to vector<16x1xf32>
    %80 = arith.divf %78, %79 : vector<16x1xf32>
    %81 = vector.broadcast %80 : vector<16x1xf32> to vector<16x32xf32>
    %82 = arith.subf %76, %81 : vector<16x32xf32>
    %83 = arith.mulf %82, %82 : vector<16x32xf32>
    %cst_29 = arith.constant dense<0.000000e+00> : vector<16xf32>
    %84 = vector.multi_reduction <add>, %83, %cst_29 [1] : vector<16x32xf32> to vector<16xf32>
    %85 = vector.shape_cast %84 : vector<16xf32> to vector<16x1xf32>
    %cst_30 = arith.constant 3.200000e+01 : f32
    %86 = vector.broadcast %cst_30 : f32 to vector<16x1xf32>
    %87 = arith.divf %85, %86 : vector<16x1xf32>
    %88 = vector.broadcast %80 : vector<16x1xf32> to vector<16x32xf32>
    %89 = arith.subf %76, %88 : vector<16x32xf32>
    %cst_31 = arith.constant 9.99999974E-6 : f32
    %90 = vector.broadcast %cst_31 : f32 to vector<16x1xf32>
    %91 = arith.addf %87, %90 : vector<16x1xf32>
    %92 = math.rsqrt %91 : vector<16x1xf32>
    %93 = vector.broadcast %92 : vector<16x1xf32> to vector<16x32xf32>
    %94 = arith.mulf %89, %93 : vector<16x32xf32>
    %95 = vector.broadcast %7 : vector<1x32xf32> to vector<16x32xf32>
    %96 = arith.mulf %94, %95 : vector<16x32xf32>
    %97 = vector.broadcast %8 : vector<1x32xf32> to vector<16x32xf32>
    %98 = arith.addf %96, %97 : vector<16x32xf32>
    %99 = arith.truncf %98 : vector<16x32xf32> to vector<16x32xbf16>
    %c0_32 = arith.constant 0 : index
    %c128 = arith.constant 128 : index
    %100 = vector.load %arg3[%c0_32, %c128] : memref<32x384xbf16, #tpu.memory_space<vmem>>, vector<32x128xbf16>
    %cst_33 = arith.constant dense<0.000000e+00> : vector<16x128xf32>
    %101 = tpu.matmul %99, %100, %cst_33 {dimension_numbers = #tpu.dot_dimension_numbers<[1], [0], [0], [1], [0, 0, 1, 1], [], []>} : vector<16x32xbf16>, vector<32x128xbf16>, vector<16x128xf32> -> vector<16x128xf32>
    %102 = vector.broadcast %9 : vector<1x128xf32> to vector<16x128xf32>
    %103 = arith.addf %101, %102 : vector<16x128xf32>
    %cst_34 = arith.constant 5.000000e-01 : f32
    %104 = vector.broadcast %cst_34 : f32 to vector<16x128xf32>
    %105 = arith.mulf %104, %103 : vector<16x128xf32>
    %cst_35 = arith.constant 4.471500e-02 : f32
    %106 = vector.broadcast %cst_35 : f32 to vector<16x128xf32>
    %107 = arith.mulf %106, %103 : vector<16x128xf32>
    %108 = arith.mulf %107, %103 : vector<16x128xf32>
    %109 = arith.mulf %108, %103 : vector<16x128xf32>
    %110 = arith.addf %103, %109 : vector<16x128xf32>
    %cst_36 = arith.constant 0.797884583 : f32
    %111 = vector.broadcast %cst_36 : f32 to vector<16x128xf32>
    %112 = arith.mulf %111, %110 : vector<16x128xf32>
    %113 = math.tanh %112 : vector<16x128xf32>
    %cst_37 = arith.constant 1.000000e+00 : f32
    %114 = vector.broadcast %cst_37 : f32 to vector<16x128xf32>
    %115 = arith.addf %114, %113 : vector<16x128xf32>
    %116 = arith.mulf %105, %115 : vector<16x128xf32>
    %117 = arith.truncf %116 : vector<16x128xf32> to vector<16x128xbf16>
    %c0_38 = arith.constant 0 : index
    %c256_39 = arith.constant 256 : index
    %118 = vector.load %arg3[%c0_38, %c256_39] : memref<32x384xbf16, #tpu.memory_space<vmem>>, vector<32x128xbf16>
    %cst_40 = arith.constant dense<0.000000e+00> : vector<16x32xf32>
    %119 = tpu.matmul %117, %118, %cst_40 {dimension_numbers = #tpu.dot_dimension_numbers<[1], [1], [0], [0], [0, 0, 1, 0], [], []>} : vector<16x128xbf16>, vector<32x128xbf16>, vector<16x32xf32> -> vector<16x32xf32>
    %120 = vector.broadcast %10 : vector<1x32xf32> to vector<16x32xf32>
    %121 = arith.addf %119, %120 : vector<16x32xf32>
    %122 = arith.addf %76, %121 : vector<16x32xf32>
    %c0_41 = arith.constant 0 : index
    %c0_42 = arith.constant 0 : index
    %123 = vector.load %arg4[%c0_41, %c0_42] : memref<16x32xf32, #tpu.memory_space<vmem>>, vector<16x32xf32>
    tpu.vector_store %arg4[%c0_41, %c0_42], %122 {strides = array<i32>} : memref<16x32xf32, #tpu.memory_space<vmem>>, vector<16x32xf32>,
    return
  }
}

</mosaic_0001>

<llo_original>
// kernel: tpu_custom_call.1
$region0: #{tpu_custom_call.1}
  #allocation0 [shape = 'u32[]', space=smem, size = 0x4, offset = 0x4, fixed_abs, tag = 'smem constant byte address 0x4 - core index']
  #allocation1 [shape = 'u32[144,128]{1,0:T(1,128)}', space=vmem, size = 0x12000, scoped, tag = 'internal scratch']
  %s0 = inlined_call_operand.vmem [shape: f32[16,32], index: 0, kind: input, shape index: {}]
  %s1 = inlined_call_operand.vmem [shape: f32[64,48], index: 1, kind: input, shape index: {}]
  %s2 = inlined_call_operand.vmem [shape: f32[1,416], index: 2, kind: input, shape index: {}]
  %s3 = inlined_call_operand.vmem [shape: bf16[32,384], index: 3, kind: input, shape index: {}]
  %s4 = inlined_call_operand.hbm [shape: f32[16,32], index: 4, kind: output, shape index: {}]
  %s5 = sld [smem:[#allocation0]]
  $region26: #{tpu_custom_call.1} parent=0
    _
  %s7 = ssub.s32 1, %s5
  %s8 = scalar_select 0, %s7, %s5
  $region1: #{tpu_custom_call.1} parent=0
    #allocation2 [shape = 'u8[8192]{0}', space=vmem, size = 0x2000, scoped, tag = 'output window, operand 0, single buffered']
    #allocation3 [shape = 's32[1]{0}', space=sflag, size = 0x4, scoped, tag = 'scoped memory for tpu_custom_call.1']
    %9 = vsyncpa [#allocation3], 0
    // Predicated region
    $region2: #{tpu_custom_call.1} parent=1 // pred_check
      _
    $region3: #{tpu_custom_call.1} parent=1 // pred_check_branch
      %11 = sbr.rel (0) target = $region5
    $region4: #{tpu_custom_call.1} parent=1 // pred_region
      _
    $region5: #{tpu_custom_call.1} parent=1 // pred_fallthru
      _
    // Predicated region
    $region6: #{tpu_custom_call.1} parent=1 // pred_check
      _
    $region7: #{tpu_custom_call.1} parent=1 // pred_check_branch
      %13 = sbr.rel (0) target = $region9
    $region8: #{tpu_custom_call.1} parent=1 // pred_region
      _
    $region9: #{tpu_custom_call.1} parent=1 // pred_fallthru
      _
    // Predicated region
    $region10: #{tpu_custom_call.1} parent=1 // pred_check
      _
    $region11: #{tpu_custom_call.1} parent=1 // pred_check_branch
      %15 = sbr.rel (0) target = $region13
    $region12: #{tpu_custom_call.1} parent=1 // pred_region
      _
    $region13: #{tpu_custom_call.1} parent=1 // pred_fallthru
      _
    // Predicated region
    $region14: #{tpu_custom_call.1} parent=1 // pred_check
      _
    $region15: #{tpu_custom_call.1} parent=1 // pred_check_branch
      %17 = sbr.rel (0) target = $region17
    $region16: #{tpu_custom_call.1} parent=1 // pred_region
      _
    $region17: #{tpu_custom_call.1} parent=1 // pred_fallthru
      _
    %v19 = vld [vmem:[%s0] sm:$0xff]
    %v20 = vld [vmem:[%s0 + $0x8] sm:$0xff]
    %v21 = vld [vmem:[%s1] sm:$0xff]
    %v22 = vld [vmem:[%s1 + $0x8] sm:$0xff]
    %v23 = vld [vmem:[%s1 + $0x10] sm:$0xff]
    %v24 = vld [vmem:[%s1 + $0x18] sm:$0xff]
    %v25 = vld [vmem:[%s1 + $0x20] sm:$0xff]
    %v26 = vld [vmem:[%s1 + $0x28] sm:$0xff]
    %v27 = vld [vmem:[%s1 + $0x30] sm:$0xff]
    %v28 = vld [vmem:[%s1 + $0x38] sm:$0xff]
    %v29 = vld [vmem:[%s2] sm:$0x1]
    %v30 = vld [vmem:[%s2] sm:$0x3]
    %v31 = vld [vmem:[%s2 + $0x1] sm:$0x1]
    %v32 = vld [vmem:[%s2 + $0x2] sm:$0x1]
    %v33 = vld [vmem:[%s2 + $0x3] sm:$0x1]
    %vm34 = vcmask 261120
    %v35 = vsel %vm34, %v19, 0.0
    %36 = vadd.xlane.f32.xlu0 %v35
    %v37 = vpop.xlane.xlu0 %36
    %v38 = vsel %vm34, %v20, 0.0
    %39 = vadd.xlane.f32.xlu0 %v38
    %v40 = vpop.xlane.xlu0 %39
    %v41 = vrcp.pop 32.0
    %v42 = vmul.f32 %v37, %v41
    %v43 = vmul.f32 %v40, %v41
    %v44 = vsub.f32 %v19, %v42
    %v45 = vsub.f32 %v20, %v43
    %v46 = vmul.f32 %v44, %v44
    %v47 = vmul.f32 %v45, %v45
    %v48 = vsel %vm34, %v46, 0.0
    %49 = vadd.xlane.f32.xlu0 %v48
    %v50 = vpop.xlane.xlu0 %49
    %v51 = vsel %vm34, %v47, 0.0
    %52 = vadd.xlane.f32.xlu0 %v51
    %v53 = vpop.xlane.xlu0 %52
    %v54 = vmul.f32 %v50, %v41
    %v55 = vmul.f32 %v53, %v41
    %v56 = vadd.f32 %v54, 1e-05
    %v57 = vadd.f32 %v55, 1e-05
    %v58 = vrsqrt.pop %v56
    %v59 = vrsqrt.pop %v57
    %v60 = vmul.f32 %v44, %v58
    %v61 = vmul.f32 %v45, %v59
    %v63 = vlaneseq
    %v64 = vshrl.u32 %v63, 7
    %v65 = vsub.s32 0, %v64
    %v66 = vrot.slane %v29, %v65
    %v68 = vmul.f32 %v60, %v66
    %v69 = vmul.f32 %v61, %v66
    %70 = vrot.lane.b32.xlu0 %v66, 96
    %v71 = vpop.permute.xlu0 %70
    %v73 = vadd.f32 %v68, %v71
    %v74 = vadd.f32 %v69, %v71
    %v75 = vpack.c.bf16 %v74, %v73
    %v76 = vld [vmem:[%s3] sm:$0xf]
    %v77 = vld [vmem:[%s3 + $0xc] sm:$0xf]
    %v78 = vld [vmem:[%s3 + $0x18] sm:$0xf]
    %v79 = vld [vmem:[%s3 + $0x24] sm:$0xf]
    %v81 = vlaneseq
    %v82 = vshrl.u32 %v81, 7
    %v83 = vsub.s32 0, %v82
    %v84 = vrot.slane %v30, %v83
    %v85 = vlaneseq
    %v86 = vshrl.u32 %v85, 7
    %v87 = vsub.s32 1, %v86
    %v88 = vrot.slane %v30, %v87
    %v93 = vunpack.c.l.b16 %v76
    %v94 = vunpack.c.l.b16 %v77
    %v95 = vunpack.c.l.b16 %v78
    %v96 = vunpack.c.l.b16 %v79
    %v97 = vpack.c.b16 %v94, %v93
    %v98 = vpack.c.b16 %v96, %v95
    %101 = vrot.lane.b32.xlu0 %v84, 64
    %v102 = vpop.permute.xlu0 %101
    %103 = vrot.lane.b32.xlu0 %v88, 64
    %v104 = vpop.permute.xlu0 %103
    %vm105 = vcmask 523264
    %v106 = vsel %vm105, %v102, %v104
    %v109 = vsel %vm34, %v75, 0
    %111 = vmatprep.subr.bf16.mxu0 0
    %112 = vmatpush1.bf16.msra.mxu0 %v97
    %113 = vmatprep.subr.bf16.mxu0 0
    %114 = vmatpush1.bf16.msra.mxu0 %v98
    %115 = vmatprep.subr.bf16.mxu0 0
    %116 = vmatpush1.bf16.msra.mxu0 0
    %117 = vmatprep.subr.bf16.mxu0 0
    %118 = vmatpush1.bf16.msra.mxu0 0
    %119 = vmatprep.subr.bf16.mxu0 0
    %120 = vmatpush1.bf16.msra.mxu0 0
    %121 = vmatprep.subr.bf16.mxu0 0
    %122 = vmatpush1.bf16.msra.mxu0 0
    %123 = vmatprep.subr.bf16.mxu0 0
    %124 = vmatpush1.bf16.msra.mxu0 0
    %125 = vmatprep.subr.bf16.mxu0 0
    %126 = vmatpush1.bf16.msra.mxu0 0
    %127 = vmatprep.subr.bf16.mxu0 0
    %128 = vmatpush1.bf16.msra.mxu0 0
    %129 = vmatprep.subr.bf16.mxu0 0
    %130 = vmatpush1.bf16.msra.mxu0 0
    %131 = vmatprep.subr.bf16.mxu0 0
    %132 = vmatpush1.bf16.msra.mxu0 0
    %133 = vmatprep.subr.bf16.mxu0 0
    %134 = vmatpush1.bf16.msra.mxu0 0
    %135 = vmatprep.subr.bf16.mxu0 0
    %136 = vmatpush1.bf16.msra.mxu0 0
    %137 = vmatprep.subr.bf16.mxu0 0
    %138 = vmatpush1.bf16.msra.mxu0 0
    %139 = vmatprep.subr.bf16.mxu0 0
    %140 = vmatpush1.bf16.msra.mxu0 0
    %141 = vmatprep.subr.bf16.mxu0 0
    %142 = vmatpush1.bf16.msra.mxu0 0
    %143 = vmatprep.mubr.bf16.mxu0 0
    %144 = vmatmul.mubr.bf16.gmra.mrb[0].mxu0 %v109
    %v145 = vpop.f32.mrb[0].mxu0
    %v146 = vadd.f32 %v106, %v145
    %v147 = vpop.f32.mrb[0].mxu0
    %v148 = vpop.f32.mrb[0].mxu0
    %v149 = vadd.f32 %v106, %v148
    %v150 = vpop.f32.mrb[0].mxu0
    %151 = vdwg.mxu0
    %v152 = vmul.f32 %v21, %v146
    %v153 = vmul.f32 %v22, %v149
    %v154 = vmul.f32 %v23, %v146
    %v155 = vmul.f32 %v24, %v149
    %v156 = vmul.f32 %v25, %v146
    %v157 = vmul.f32 %v26, %v149
    %v158 = vmul.f32 %v27, %v146
    %v159 = vmul.f32 %v28, %v149
    %v160 = vpack.c.bf16 %v153, %v152
    %v161 = vpack.c.bf16 %v155, %v154
    %v162 = vpack.c.bf16 %v157, %v156
    %v163 = vpack.c.bf16 %v159, %v158
    %v164 = vpack.c.bf16 %v149, %v146
    %166 = vrot.lane.b32.xlu0 %v164, 96
    %v167 = vpop.permute.xlu0 %166
    %176 = vrot.lane.b32.xlu0 %v21, 96
    %v177 = vpop.permute.xlu0 %176
    %178 = vrot.lane.b32.xlu0 %v22, 96
    %v179 = vpop.permute.xlu0 %178
    %180 = vrot.lane.b32.xlu0 %v23, 96
    %v181 = vpop.permute.xlu0 %180
    %182 = vrot.lane.b32.xlu0 %v24, 96
    %v183 = vpop.permute.xlu0 %182
    %184 = vrot.lane.b32.xlu0 %v25, 96
    %v185 = vpop.permute.xlu0 %184
    %186 = vrot.lane.b32.xlu0 %v26, 96
    %v187 = vpop.permute.xlu0 %186
    %188 = vrot.lane.b32.xlu0 %v27, 96
    %v189 = vpop.permute.xlu0 %188
    %190 = vrot.lane.b32.xlu0 %v28, 96
    %v191 = vpop.permute.xlu0 %190
    %v201 = vsel %vm34, %v160, 0
    %v204 = vsel %vm34, %v161, 0
    %v207 = vsel %vm34, %v162, 0
    %v210 = vsel %vm34, %v163, 0
    %v213 = vsel %vm34, %v167, 0
    %215 = vmatprep.subr.bf16.mxu0 0
    %216 = vmatpush1.bf16.xpose.msra.mxu0 %v213
    %217 = vmatprep.subr.bf16.mxu0 0
    %218 = vmatpush1.bf16.xpose.msra.mxu0 0
    %219 = vmatprep.subr.bf16.mxu0 0
    %220 = vmatpush1.bf16.xpose.msra.mxu0 0
    %221 = vmatprep.subr.bf16.mxu0 0
    %222 = vmatpush1.bf16.xpose.msra.mxu0 0
    %223 = vmatprep.subr.bf16.mxu0 0
    %224 = vmatpush1.bf16.xpose.msra.mxu0 0
    %225 = vmatprep.subr.bf16.mxu0 0
    %226 = vmatpush1.bf16.xpose.msra.mxu0 0
    %227 = vmatprep.subr.bf16.mxu0 0
    %228 = vmatpush1.bf16.xpose.msra.mxu0 0
    %229 = vmatprep.subr.bf16.mxu0 0
    %230 = vmatpush1.bf16.xpose.msra.mxu0 0
    %231 = vmatprep.subr.bf16.mxu0 0
    %232 = vmatpush1.bf16.xpose.msra.mxu0 0
    %233 = vmatprep.subr.bf16.mxu0 0
    %234 = vmatpush1.bf16.xpose.msra.mxu0 0
    %235 = vmatprep.subr.bf16.mxu0 0
    %236 = vmatpush1.bf16.xpose.msra.mxu0 0
    %237 = vmatprep.subr.bf16.mxu0 0
    %238 = vmatpush1.bf16.xpose.msra.mxu0 0
    %239 = vmatprep.subr.bf16.mxu0 0
    %240 = vmatpush1.bf16.xpose.msra.mxu0 0
    %241 = vmatprep.subr.bf16.mxu0 0
    %242 = vmatpush1.bf16.xpose.msra.mxu0 0
    %243 = vmatprep.subr.bf16.mxu0 0
    %244 = vmatpush1.bf16.xpose.msra.mxu0 0
    %245 = vmatprep.subr.bf16.mxu0 0
    %246 = vmatpush1.bf16.xpose.msra.mxu0 0
    %247 = vmatprep.mubr.bf16.mxu0 0
    %248 = vmatmul.mubr.bf16.gmra.mrb[0].mxu0 %v201
    %v249 = vpop.f32.mrb[0].mxu0
    %v250 = vadd.f32 %v177, %v249
    %v251 = vpop.f32.mrb[0].mxu0
    %v252 = vpop.f32.mrb[0].mxu0
    %v253 = vadd.f32 %v179, %v252
    %v254 = vpop.f32.mrb[0].mxu0
    %255 = vmatprep.mubr.bf16.mxu0 0
    %256 = vmatmul.mubr.bf16.gmra.mrb[0].mxu0 %v204
    %v257 = vpop.f32.mrb[0].mxu0
    %v258 = vadd.f32 %v181, %v257
    %v259 = vpop.f32.mrb[0].mxu0
    %v260 = vpop.f32.mrb[0].mxu0
    %v261 = vadd.f32 %v183, %v260
    %v262 = vpop.f32.mrb[0].mxu0
    %263 = vmatprep.mubr.bf16.mxu0 0
    %264 = vmatmul.mubr.bf16.gmra.mrb[0].mxu0 %v207
    %v265 = vpop.f32.mrb[0].mxu0
    %v266 = vadd.f32 %v185, %v265
    %v267 = vpop.f32.mrb[0].mxu0
    %v268 = vpop.f32.mrb[0].mxu0
    %v269 = vadd.f32 %v187, %v268
    %v270 = vpop.f32.mrb[0].mxu0
    %271 = vmatprep.mubr.bf16.mxu0 0
    %272 = vmatmul.mubr.bf16.gmra.mrb[0].mxu0 %v210
    %v273 = vpop.f32.mrb[0].mxu0
    %v274 = vadd.f32 %v189, %v273
    %v275 = vpop.f32.mrb[0].mxu0
    %v276 = vpop.f32.mrb[0].mxu0
    %v277 = vadd.f32 %v191, %v276
    %v278 = vpop.f32.mrb[0].mxu0
    %279 = vdwg.mxu0
    %vm280 = vcmask 130048
    %v281 = vsel %vm280, %v250, -inf
    %282 = vmax.xlane.f32.xlu0 %v281
    %v283 = vpop.xlane.xlu0 %282
    %v284 = vsel %vm280, %v253, -inf
    %285 = vmax.xlane.f32.xlu0 %v284
    %v286 = vpop.xlane.xlu0 %285
    %v287 = vsel %vm280, %v258, -inf
    %288 = vmax.xlane.f32.xlu0 %v287
    %v289 = vpop.xlane.xlu0 %288
    %v290 = vsel %vm280, %v261, -inf
    %291 = vmax.xlane.f32.xlu0 %v290
    %v292 = vpop.xlane.xlu0 %291
    %v293 = vsel %vm280, %v266, -inf
    %294 = vmax.xlane.f32.xlu0 %v293
    %v295 = vpop.xlane.xlu0 %294
    %v296 = vsel %vm280, %v269, -inf
    %297 = vmax.xlane.f32.xlu0 %v296
    %v298 = vpop.xlane.xlu0 %297
    %v299 = vsel %vm280, %v274, -inf
    %300 = vmax.xlane.f32.xlu0 %v299
    %v301 = vpop.xlane.xlu0 %300
    %v302 = vsel %vm280, %v277, -inf
    %303 = vmax.xlane.f32.xlu0 %v302
    %v304 = vpop.xlane.xlu0 %303
    %v305 = vsub.f32 %v250, %v283
    %v306 = vsub.f32 %v253, %v286
    %v307 = vsub.f32 %v258, %v289
    %v308 = vsub.f32 %v261, %v292
    %v309 = vsub.f32 %v266, %v295
    %v310 = vsub.f32 %v269, %v298
    %v311 = vsub.f32 %v274, %v301
    %v312 = vsub.f32 %v277, %v304
    %v313 = vmul.f32 %v305, 1.442695
    %v314 = vpow.pop %v313
    %v315 = vmul.f32 %v306, 1.442695
    %v316 = vpow.pop %v315
    %v317 = vmul.f32 %v307, 1.442695
    %v318 = vpow.pop %v317
    %v319 = vmul.f32 %v308, 1.442695
    %v320 = vpow.pop %v319
    %v321 = vmul.f32 %v309, 1.442695
    %v322 = vpow.pop %v321
    %v323 = vmul.f32 %v310, 1.442695
    %v324 = vpow.pop %v323
    %v325 = vmul.f32 %v311, 1.442695
    %v326 = vpow.pop %v325
    %v327 = vmul.f32 %v312, 1.442695
    %v328 = vpow.pop %v327
    %v329 = vsel %vm280, %v314, 0.0
    %330 = vadd.xlane.f32.xlu0 %v329
    %v331 = vpop.xlane.xlu0 %330
    %v332 = vsel %vm280, %v316, 0.0
    %333 = vadd.xlane.f32.xlu0 %v332
    %v334 = vpop.xlane.xlu0 %333
    %v335 = vsel %vm280, %v318, 0.0
    %336 = vadd.xlane.f32.xlu0 %v335
    %v337 = vpop.xlane.xlu0 %336
    %v338 = vsel %vm280, %v320, 0.0
    %339 = vadd.xlane.f32.xlu0 %v338
    %v340 = vpop.xlane.xlu0 %339
    %v341 = vsel %vm280, %v322, 0.0
    %342 = vadd.xlane.f32.xlu0 %v341
    %v343 = vpop.xlane.xlu0 %342
    %v344 = vsel %vm280, %v324, 0.0
    %345 = vadd.xlane.f32.xlu0 %v344
    %v346 = vpop.xlane.xlu0 %345
    %v347 = vsel %vm280, %v326, 0.0
    %348 = vadd.xlane.f32.xlu0 %v347
    %v349 = vpop.xlane.xlu0 %348
    %v350 = vsel %vm280, %v328, 0.0
    %351 = vadd.xlane.f32.xlu0 %v350
    %v352 = vpop.xlane.xlu0 %351
    %v353 = vrcp.pop %v331
    %v354 = vrcp.pop %v334
    %v355 = vrcp.pop %v337
    %v356 = vrcp.pop %v340
    %v357 = vrcp.pop %v343
    %v358 = vrcp.pop %v346
    %v359 = vrcp.pop %v349
    %v360 = vrcp.pop %v352
    %v361 = vmul.f32 %v314, %v353
    %v362 = vmul.f32 %v316, %v354
    %v363 = vmul.f32 %v318, %v355
    %v364 = vmul.f32 %v320, %v356
    %v365 = vmul.f32 %v322, %v357
    %v366 = vmul.f32 %v324, %v358
    %v367 = vmul.f32 %v326, %v359
    %v368 = vmul.f32 %v328, %v360
    %v369 = vpack.c.bf16 %v362, %v361
    %v370 = vpack.c.bf16 %v364, %v363
    %v371 = vpack.c.bf16 %v366, %v365
    %v372 = vpack.c.bf16 %v368, %v367
    %373 = vrot.lane.b32.xlu0 %v164, 64
    %v374 = vpop.permute.xlu0 %373
    %v377 = vsel %vm280, %v369, 0
    %v380 = vsel %vm280, %v370, 0
    %v383 = vsel %vm280, %v371, 0
    %v386 = vsel %vm280, %v372, 0
    %388 = vmatprep.subr.bf16.mxu0 0
    %389 = vmatpush1.bf16.msra.mxu0 %v374
    %390 = vmatprep.subr.bf16.mxu0 0
    %391 = vmatpush1.bf16.msra.mxu0 0
    %392 = vmatprep.subr.bf16.mxu0 0
    %393 = vmatpush1.bf16.msra.mxu0 0
    %394 = vmatprep.subr.bf16.mxu0 0
    %395 = vmatpush1.bf16.msra.mxu0 0
    %396 = vmatprep.subr.bf16.mxu0 0
    %397 = vmatpush1.bf16.msra.mxu0 0
    %398 = vmatprep.subr.bf16.mxu0 0
    %399 = vmatpush1.bf16.msra.mxu0 0
    %400 = vmatprep.subr.bf16.mxu0 0
    %401 = vmatpush1.bf16.msra.mxu0 0
    %402 = vmatprep.subr.bf16.mxu0 0
    %403 = vmatpush1.bf16.msra.mxu0 0
    %404 = vmatprep.subr.bf16.mxu0 0
    %405 = vmatpush1.bf16.msra.mxu0 0
    %406 = vmatprep.subr.bf16.mxu0 0
    %407 = vmatpush1.bf16.msra.mxu0 0
    %408 = vmatprep.subr.bf16.mxu0 0
    %409 = vmatpush1.bf16.msra.mxu0 0
    %410 = vmatprep.subr.bf16.mxu0 0
    %411 = vmatpush1.bf16.msra.mxu0 0
    %412 = vmatprep.subr.bf16.mxu0 0
    %413 = vmatpush1.bf16.msra.mxu0 0
    %414 = vmatprep.subr.bf16.mxu0 0
    %415 = vmatpush1.bf16.msra.mxu0 0
    %416 = vmatprep.subr.bf16.mxu0 0
    %417 = vmatpush1.bf16.msra.mxu0 0
    %418 = vmatprep.subr.bf16.mxu0 0
    %419 = vmatpush1.bf16.msra.mxu0 0
    %420 = vmatprep.mubr.bf16.mxu0 0
    %421 = vmatmul.mubr.bf16.gmra.mrb[0].mxu0 %v377
    %v422 = vpop.f32.mrb[0].mxu0
    %v423 = vadd.f32 0.0, %v422
    %v424 = vpop.f32.mrb[0].mxu0
    %v425 = vpop.f32.mrb[0].mxu0
    %v426 = vadd.f32 0.0, %v425
    %v427 = vpop.f32.mrb[0].mxu0
    %428 = vmatprep.mubr.bf16.mxu0 0
    %429 = vmatmul.mubr.bf16.gmra.mrb[0].mxu0 %v380
    %v430 = vpop.f32.mrb[0].mxu0
    %v431 = vadd.f32 0.0, %v430
    %v432 = vpop.f32.mrb[0].mxu0
    %v433 = vpop.f32.mrb[0].mxu0
    %v434 = vadd.f32 0.0, %v433
    %v435 = vpop.f32.mrb[0].mxu0
    %436 = vmatprep.mubr.bf16.mxu0 0
    %437 = vmatmul.mubr.bf16.gmra.mrb[0].mxu0 %v383
    %v438 = vpop.f32.mrb[0].mxu0
    %v439 = vadd.f32 0.0, %v438
    %v440 = vpop.f32.mrb[0].mxu0
    %v441 = vpop.f32.mrb[0].mxu0
    %v442 = vadd.f32 0.0, %v441
    %v443 = vpop.f32.mrb[0].mxu0
    %444 = vmatprep.mubr.bf16.mxu0 0
    %445 = vmatmul.mubr.bf16.gmra.mrb[0].mxu0 %v386
    %v446 = vpop.f32.mrb[0].mxu0
    %v447 = vadd.f32 0.0, %v446
    %v448 = vpop.f32.mrb[0].mxu0
    %v449 = vpop.f32.mrb[0].mxu0
    %v450 = vadd.f32 0.0, %v449
    %v451 = vpop.f32.mrb[0].mxu0
    %452 = vdwg.mxu0
    %v453 = vmul.f32 %v423, %v21
    %v454 = vmul.f32 %v426, %v22
    %v455 = vmul.f32 %v431, %v23
    %v456 = vmul.f32 %v434, %v24
    %v457 = vmul.f32 %v439, %v25
    %v458 = vmul.f32 %v442, %v26
    %v459 = vmul.f32 %v447, %v27
    %v460 = vmul.f32 %v450, %v28
    %v461 = vadd.f32 %v453, %v455
    %v462 = vadd.f32 %v454, %v456
    %v463 = vadd.f32 %v461, %v457
    %v464 = vadd.f32 %v462, %v458
    %v465 = vadd.f32 %v463, %v459
    %v466 = vadd.f32 %v464, %v460
    %v467 = vpack.c.bf16 %v466, %v465
    %v469 = vlaneseq
    %v470 = vshrl.u32 %v469, 7
    %v471 = vsub.s32 0, %v470
    %v472 = vrot.slane %v31, %v471
    %473 = vrot.lane.b32.xlu0 %v97, 32
    %v474 = vpop.permute.xlu0 %473
    %475 = vrot.lane.b32.xlu0 %v98, 32
    %v476 = vpop.permute.xlu0 %475
    %479 = vrot.lane.b32.xlu0 %v472, 96
    %v480 = vpop.permute.xlu0 %479
    %v483 = vsel %vm34, %v467, 0
    %485 = vmatprep.subr.bf16.mxu0 0
    %486 = vmatpush1.bf16.msra.mxu0 %v474
    %487 = vmatprep.subr.bf16.mxu0 0
    %488 = vmatpush1.bf16.msra.mxu0 %v476
    %489 = vmatprep.subr.bf16.mxu0 0
    %490 = vmatpush1.bf16.msra.mxu0 0
    %491 = vmatprep.subr.bf16.mxu0 0
    %492 = vmatpush1.bf16.msra.mxu0 0
    %493 = vmatprep.subr.bf16.mxu0 0
    %494 = vmatpush1.bf16.msra.mxu0 0
    %495 = vmatprep.subr.bf16.mxu0 0
    %496 = vmatpush1.bf16.msra.mxu0 0
    %497 = vmatprep.subr.bf16.mxu0 0
    %498 = vmatpush1.bf16.msra.mxu0 0
    %499 = vmatprep.subr.bf16.mxu0 0
    %500 = vmatpush1.bf16.msra.mxu0 0
    %501 = vmatprep.subr.bf16.mxu0 0
    %502 = vmatpush1.bf16.msra.mxu0 0
    %503 = vmatprep.subr.bf16.mxu0 0
    %504 = vmatpush1.bf16.msra.mxu0 0
    %505 = vmatprep.subr.bf16.mxu0 0
    %506 = vmatpush1.bf16.msra.mxu0 0
    %507 = vmatprep.subr.bf16.mxu0 0
    %508 = vmatpush1.bf16.msra.mxu0 0
    %509 = vmatprep.subr.bf16.mxu0 0
    %510 = vmatpush1.bf16.msra.mxu0 0
    %511 = vmatprep.subr.bf16.mxu0 0
    %512 = vmatpush1.bf16.msra.mxu0 0
    %513 = vmatprep.subr.bf16.mxu0 0
    %514 = vmatpush1.bf16.msra.mxu0 0
    %515 = vmatprep.subr.bf16.mxu0 0
    %516 = vmatpush1.bf16.msra.mxu0 0
    %517 = vmatprep.mubr.bf16.mxu0 0
    %518 = vmatmul.mubr.bf16.gmra.mrb[0].mxu0 %v483
    %v519 = vpop.f32.mrb[0].mxu0
    %v520 = vadd.f32 %v480, %v519
    %v521 = vpop.f32.mrb[0].mxu0
    %v522 = vpop.f32.mrb[0].mxu0
    %v523 = vadd.f32 %v480, %v522
    %v524 = vpop.f32.mrb[0].mxu0
    %525 = vdwg.mxu0
    %v526 = vadd.f32 %v19, %v520
    %v527 = vadd.f32 %v20, %v523
    %v528 = vsel %vm34, %v526, 0.0
    %529 = vadd.xlane.f32.xlu0 %v528
    %v530 = vpop.xlane.xlu0 %529
    %v531 = vsel %vm34, %v527, 0.0
    %532 = vadd.xlane.f32.xlu0 %v531
    %v533 = vpop.xlane.xlu0 %532
    %v534 = vmul.f32 %v530, %v41
    %v535 = vmul.f32 %v533, %v41
    %v536 = vsub.f32 %v526, %v534
    %v537 = vsub.f32 %v527, %v535
    %v538 = vmul.f32 %v536, %v536
    %v539 = vmul.f32 %v537, %v537
    %v540 = vsel %vm34, %v538, 0.0
    %541 = vadd.xlane.f32.xlu0 %v540
    %v542 = vpop.xlane.xlu0 %541
    %v543 = vsel %vm34, %v539, 0.0
    %544 = vadd.xlane.f32.xlu0 %v543
    %v545 = vpop.xlane.xlu0 %544
    %v546 = vmul.f32 %v542, %v41
    %v547 = vmul.f32 %v545, %v41
    %v548 = vadd.f32 %v546, 1e-05
    %v549 = vadd.f32 %v547, 1e-05
    %v550 = vrsqrt.pop %v548
    %v551 = vrsqrt.pop %v549
    %v552 = vmul.f32 %v536, %v550
    %v553 = vmul.f32 %v537, %v551
    %554 = vrot.lane.b32.xlu0 %v472, 64
    %v555 = vpop.permute.xlu0 %554
    %v557 = vmul.f32 %v552, %v555
    %v558 = vmul.f32 %v553, %v555
    %559 = vrot.lane.b32.xlu0 %v472, 32
    %v560 = vpop.permute.xlu0 %559
    %v562 = vadd.f32 %v557, %v560
    %v563 = vadd.f32 %v558, %v560
    %v564 = vpack.c.bf16 %v563, %v562
    %v565 = vld [vmem:[%s3 + $0x4] sm:$0xf]
    %v566 = vld [vmem:[%s3 + $0x10] sm:$0xf]
    %v567 = vld [vmem:[%s3 + $0x1c] sm:$0xf]
    %v568 = vld [vmem:[%s3 + $0x28] sm:$0xf]
    %v570 = vlaneseq
    %v571 = vshrl.u32 %v570, 7
    %v572 = vsub.s32 0, %v571
    %v573 = vrot.slane %v32, %v572
    %v579 = vunpack.c.l.b16 %v565
    %v580 = vunpack.c.l.b16 %v566
    %v581 = vunpack.c.l.b16 %v567
    %v582 = vunpack.c.l.b16 %v568
    %v583 = vpack.c.b16 %v580, %v579
    %v584 = vpack.c.b16 %v582, %v581
    %v588 = vsel %vm34, %v564, 0
    %590 = vmatprep.subr.bf16.mxu0 0
    %591 = vmatpush1.bf16.msra.mxu0 %v583
    %592 = vmatprep.subr.bf16.mxu0 0
    %593 = vmatpush1.bf16.msra.mxu0 %v584
    %594 = vmatprep.subr.bf16.mxu0 0
    %595 = vmatpush1.bf16.msra.mxu0 0
    %596 = vmatprep.subr.bf16.mxu0 0
    %597 = vmatpush1.bf16.msra.mxu0 0
    %598 = vmatprep.subr.bf16.mxu0 0
    %599 = vmatpush1.bf16.msra.mxu0 0
    %600 = vmatprep.subr.bf16.mxu0 0
    %601 = vmatpush1.bf16.msra.mxu0 0
    %602 = vmatprep.subr.bf16.mxu0 0
    %603 = vmatpush1.bf16.msra.mxu0 0
    %604 = vmatprep.subr.bf16.mxu0 0
    %605 = vmatpush1.bf16.msra.mxu0 0
    %606 = vmatprep.subr.bf16.mxu0 0
    %607 = vmatpush1.bf16.msra.mxu0 0
    %608 = vmatprep.subr.bf16.mxu0 0
    %609 = vmatpush1.bf16.msra.mxu0 0
    %610 = vmatprep.subr.bf16.mxu0 0
    %611 = vmatpush1.bf16.msra.mxu0 0
    %612 = vmatprep.subr.bf16.mxu0 0
    %613 = vmatpush1.bf16.msra.mxu0 0
    %614 = vmatprep.subr.bf16.mxu0 0
    %615 = vmatpush1.bf16.msra.mxu0 0
    %616 = vmatprep.subr.bf16.mxu0 0
    %617 = vmatpush1.bf16.msra.mxu0 0
    %618 = vmatprep.subr.bf16.mxu0 0
    %619 = vmatpush1.bf16.msra.mxu0 0
    %620 = vmatprep.subr.bf16.mxu0 0
    %621 = vmatpush1.bf16.msra.mxu0 0
    %622 = vmatprep.mubr.bf16.mxu0 0
    %623 = vmatmul.mubr.bf16.gmra.mrb[0].mxu0 %v588
    %v624 = vpop.f32.mrb[0].mxu0
    %v625 = vadd.f32 %v573, %v624
    %v626 = vpop.f32.mrb[0].mxu0
    %v627 = vpop.f32.mrb[0].mxu0
    %v628 = vadd.f32 %v573, %v627
    %v629 = vpop.f32.mrb[0].mxu0
    %630 = vdwg.mxu0
    %v631 = vmul.f32 %v625, 0.5
    %v632 = vmul.f32 %v628, 0.5
    %v633 = vmul.f32 %v625, 0.044715
    %v634 = vmul.f32 %v628, 0.044715
    %v635 = vmul.f32 %v633, %v625
    %v636 = vmul.f32 %v634, %v628
    %v637 = vmul.f32 %v635, %v625
    %v638 = vmul.f32 %v636, %v628
    %v639 = vadd.f32 %v625, %v637
    %v640 = vadd.f32 %v628, %v638
    %v641 = vmul.f32 %v639, 0.7978846
    %v642 = vmul.f32 %v640, 0.7978846
    %v643 = vtanh.pop %v641
    %v644 = vtanh.pop %v642
    %v645 = vadd.f32 %v643, 1.0
    %v646 = vadd.f32 %v644, 1.0
    %v647 = vmul.f32 %v631, %v645
    %v648 = vmul.f32 %v632, %v646
    %v649 = vpack.c.bf16 %v648, %v647
    %v650 = vld [vmem:[%s3 + $0x8] sm:$0xf]
    %v651 = vld [vmem:[%s3 + $0x14] sm:$0xf]
    %v652 = vld [vmem:[%s3 + $0x20] sm:$0xf]
    %v653 = vld [vmem:[%s3 + $0x2c] sm:$0xf]
    %v655 = vlaneseq
    %v656 = vshrl.u32 %v655, 7
    %v657 = vsub.s32 0, %v656
    %v658 = vrot.slane %v33, %v657
    %v664 = vunpack.c.l.b16 %v650
    %v665 = vunpack.c.l.b16 %v651
    %v666 = vunpack.c.l.b16 %v652
    %v667 = vunpack.c.l.b16 %v653
    %v668 = vpack.c.b16 %v665, %v664
    %v669 = vpack.c.b16 %v667, %v666
    %672 = vmatprep.subr.bf16.mxu0 0
    %673 = vmatpush1.bf16.xpose.msra.mxu0 %v668
    %674 = vmatprep.subr.bf16.mxu0 0
    %675 = vmatpush1.bf16.xpose.msra.mxu0 %v669
    %676 = vmatprep.subr.bf16.mxu0 0
    %677 = vmatpush1.bf16.xpose.msra.mxu0 0
    %678 = vmatprep.subr.bf16.mxu0 0
    %679 = vmatpush1.bf16.xpose.msra.mxu0 0
    %680 = vmatprep.subr.bf16.mxu0 0
    %681 = vmatpush1.bf16.xpose.msra.mxu0 0
    %682 = vmatprep.subr.bf16.mxu0 0
    %683 = vmatpush1.bf16.xpose.msra.mxu0 0
    %684 = vmatprep.subr.bf16.mxu0 0
    %685 = vmatpush1.bf16.xpose.msra.mxu0 0
    %686 = vmatprep.subr.bf16.mxu0 0
    %687 = vmatpush1.bf16.xpose.msra.mxu0 0
    %688 = vmatprep.subr.bf16.mxu0 0
    %689 = vmatpush1.bf16.xpose.msra.mxu0 0
    %690 = vmatprep.subr.bf16.mxu0 0
    %691 = vmatpush1.bf16.xpose.msra.mxu0 0
    %692 = vmatprep.subr.bf16.mxu0 0
    %693 = vmatpush1.bf16.xpose.msra.mxu0 0
    %694 = vmatprep.subr.bf16.mxu0 0
    %695 = vmatpush1.bf16.xpose.msra.mxu0 0
    %696 = vmatprep.subr.bf16.mxu0 0
    %697 = vmatpush1.bf16.xpose.msra.mxu0 0
    %698 = vmatprep.subr.bf16.mxu0 0
    %699 = vmatpush1.bf16.xpose.msra.mxu0 0
    %700 = vmatprep.subr.bf16.mxu0 0
    %701 = vmatpush1.bf16.xpose.msra.mxu0 0
    %702 = vmatprep.subr.bf16.mxu0 0
    %703 = vmatpush1.bf16.xpose.msra.mxu0 0
    %704 = vmatprep.mubr.bf16.mxu0 0
    %705 = vmatmul.mubr.bf16.gmra.mrb[0].mxu0 %v649
    %v706 = vpop.f32.mrb[0].mxu0
    %v707 = vadd.f32 %v658, %v706
    %v708 = vpop.f32.mrb[0].mxu0
    %v709 = vpop.f32.mrb[0].mxu0
    %v710 = vadd.f32 %v658, %v709
    %v711 = vpop.f32.mrb[0].mxu0
    %712 = vdwg.mxu0
    %v713 = vadd.f32 %v526, %v707
    %v714 = vadd.f32 %v527, %v710
    %715 = vst.msk [vmem:[#allocation2] sm:$0xff] %vm34, %v713
    %716 = vst.msk [vmem:[#allocation2 + $0x8] sm:$0xff] %vm34, %v714
    // Predicated region
    $region18: #{tpu_custom_call.1} parent=1 // pred_check
      _
    $region19: #{tpu_custom_call.1} parent=1 // pred_check_branch
      %718 = sbr.rel (0) target = $region21
    $region20: #{tpu_custom_call.1} parent=1 // pred_region
      %s720 = ssub.s32 256, 256
      %721 = vsyncadd [#allocation3], %s720
      %s722 = sshll.u32 [#allocation2], 4
      %s723 = int_to_ptr.vmem [resolvable:$true] %s722
      %728 = dma.vmem_to_hbm [thread:$0]  %s723, 256, %s4, [#allocation3], 128, 128, 8
    $region21: #{tpu_custom_call.1} parent=1 // pred_fallthru
      _
    // Predicated region
    $region22: #{tpu_custom_call.1} parent=1 // pred_check
      _
    $region23: #{tpu_custom_call.1} parent=1 // pred_check_branch
      %730 = sbr.rel (0) target = $region25
    $region24: #{tpu_custom_call.1} parent=1 // pred_region
      %731 = dma.done [#allocation3], 256
    $region25: #{tpu_custom_call.1} parent=1 // pred_fallthru
      _
    %732 = vsyncpa [#allocation3], 1

</llo_original>
